<compile_context>
chip_gen: v5e
topology: v5e:2x2
jax: 0.10.0
libtpu: 0.0.40
codegen_flags: <defaults>
</compile_context>

<pallas_src>
import jax
import jax.numpy as jnp
from jax.experimental import pallas as pl
from jax.experimental.pallas import tpu as pltpu

N = 64        # nodes
F_IN = 2      # input node features
HID = 32      # hidden width
G = 2         # graphs in the batch
E = 160       # edges
BN_EPS = 1e-5
NODE_W = 64   # width of the packed per-node slab ([XW1 | mask | 0])


# ---------------------------------------------------------------- kernel ----
def _gelu(v):
    # tanh-approx GELU; tanh executes on the EUP slot (error ~1e-3, well
    # inside check tolerance).
    return 0.5 * v * (1.0 + jnp.tanh(0.7978845608028654 * (v + 0.044715 * v * v * v)))


def gcn_tiny_kernel(a_ref, node_ref, w_ref, p_ref, out_ref):
    # a_ref:    (N, N)     bf16  normalized adjacency (rows = target nodes)
    # node_ref: (N, NODE_W) bf16  cols [0:HID] = X@W1 (BN folded),
    #                             cols [HID:HID+G] = one-hot graph mask
    # w_ref:    (HID, 256) bf16  cols [0:128]  = conv2..conv5 weights (BN folded)
    #                             cols [128:130] = folded classifier weight, rest 0
    # p_ref:    (8, 128)   f32   rows 0..4 = conv biases (BN folded) in lanes 0:HID
    #                             row 5     = folded classifier bias in lanes 0:2
    # out_ref:  (G, 128)   f32   logits in lanes 0:2 (lane-dense store)
    a = a_ref[...]                                        # (N, N) bf16
    num_graphs = out_ref.shape[0]

    # layer 1: X@W1 was precomputed host-side (K=2 matmul not worth an MXU trip)
    h = jnp.dot(a, node_ref[:, 0:HID], preferred_element_type=jnp.float32)
    h = _gelu(h + p_ref[0:1, 0:HID])

    # layers 2..5 (BatchNorm folded into W/b; dropout = identity in eval mode)
    for i in range(4):
        w_i = w_ref[:, i * HID:(i + 1) * HID]             # (HID, HID) bf16
        hw = jnp.dot(h.astype(jnp.bfloat16), w_i,
                     preferred_element_type=jnp.float32)  # (N, HID) f32
        h = jnp.dot(a, hw.astype(jnp.bfloat16),
                    preferred_element_type=jnp.float32)
        h = _gelu(h + p_ref[i + 1:i + 2, 0:HID])

    # global_max_pool(x, batch) over the one-hot membership mask
    mask = node_ref[:, HID:HID + num_graphs]              # (N, G) bf16 one-hot
    neg = jnp.float32(-1e30)
    parts = [jnp.max(jnp.where(mask[:, g:g + 1] > 0.5, h, neg),
                     axis=0, keepdims=True)
             for g in range(num_graphs)]                  # static tiny loop
    pooled = jnp.concatenate(parts, axis=0)               # (G, HID) f32

    # dropout (eval) -> identity; lin1 and lin folded into one affine.
    # classifier weight is zero-padded to 128 lanes -> unmasked lane-dense store.
    z = jnp.dot(pooled.astype(jnp.bfloat16), w_ref[:, 4 * HID:4 * HID + 128],
                preferred_element_type=jnp.float32)       # (G, 128)
    out_ref[...] = z + p_ref[5:6, :]


# ----------------------------------------------------------------- glue -----
def build_norm_adj(ei, num_nodes):
    """PyG gcn_norm: add self loops, D^-1/2 (A+I) D^-1/2, rows = target."""
    row, col = ei[0], ei[1]                               # source, target
    loop = jnp.arange(num_nodes, dtype=ei.dtype)
    row = jnp.concatenate([row, loop])
    col = jnp.concatenate([col, loop])
    ew = jnp.ones(row.shape[0], jnp.float32)
    deg = jnp.zeros(num_nodes, jnp.float32).at[col].add(ew)
    dis = jnp.where(deg > 0, 1.0 / jnp.sqrt(deg), 0.0)
    norm = dis[row] * ew * dis[col]
    a = jnp.zeros((num_nodes, num_nodes), jnp.float32).at[col, row].add(norm)
    return a


def init_params(key):
    ks = jax.random.split(key, 12)

    def glorot(k, shape):
        lim = (6.0 / (shape[0] + shape[1])) ** 0.5
        return jax.random.uniform(k, shape, jnp.float32, -lim, lim)

    p = {}
    p["w1"] = glorot(ks[0], (F_IN, HID))                              # conv1
    p["w_stack"] = jnp.stack([glorot(ks[1 + i], (HID, HID))           # conv2..5
                              for i in range(4)])
    p["b_stack"] = jnp.zeros((5, HID), jnp.float32)                   # GCNConv biases
    # BatchNorm fresh-module state: gamma=1, beta=0, mean=0, var=1 -> fold
    gamma = jnp.ones((3, HID), jnp.float32)
    beta = jnp.zeros((3, HID), jnp.float32)
    rmean = jnp.zeros((3, HID), jnp.float32)
    rvar = jnp.ones((3, HID), jnp.float32)
    p["bn_scale"] = gamma / jnp.sqrt(rvar + BN_EPS)
    p["bn_shift"] = beta - rmean * p["bn_scale"]
    p["wl1"] = glorot(ks[5], (HID, 10))
    p["bl1"] = jax.random.uniform(ks[6], (1, 10), jnp.float32, -0.1, 0.1)
    p["wl2"] = glorot(ks[7], (10, 2))
    p["bl2"] = jax.random.uniform(ks[8], (1, 2), jnp.float32, -0.1, 0.1)
    return p


def fold_params(params):
    """Fold BN into conv W/b, fold lin1∘lin, and pack into lane-dense slabs."""
    s, t = params["bn_scale"], params["bn_shift"]         # (3, HID)
    b = params["b_stack"]
    # BN after conv:  (A(XW)+b)*s + t  ==  A(X(W*s)) + (b*s + t)
    w1f = params["w1"] * s[0][None, :]                    # conv1 (+bn1)
    conv_w = [params["w_stack"][0],                       # conv2
              params["w_stack"][1] * s[1][None, :],       # conv3 (+bn2)
              params["w_stack"][2],                       # conv4
              params["w_stack"][3] * s[2][None, :]]       # conv5 (+bn3)
    conv_b = jnp.stack([b[0] * s[0] + t[0],
                        b[1],
                        b[2] * s[1] + t[1],
                        b[3],
                        b[4] * s[2] + t[2]])              # (5, HID)
    # lin1 -> lin has no nonlinearity in between: fold into one affine
    wf = params["wl1"] @ params["wl2"]                    # (HID, 2)
    bf = params["bl1"][0] @ params["wl2"] + params["bl2"][0]   # (2,)

    w_slab = jnp.zeros((HID, 256), jnp.float32)
    for i, w in enumerate(conv_w):
        w_slab = w_slab.at[:, i * HID:(i + 1) * HID].set(w)
    w_slab = w_slab.at[:, 4 * HID:4 * HID + 2].set(wf)
    w_slab = w_slab.astype(jnp.bfloat16)

    p_slab = jnp.zeros((8, 128), jnp.float32)
    p_slab = p_slab.at[0:5, 0:HID].set(conv_b)
    p_slab = p_slab.at[5, 0:2].set(bf)
    return w1f, w_slab, p_slab


def gcn_tiny_forward(params, x, ei, batch, num_graphs):
    num_nodes = x.shape[0]
    assert HID + num_graphs <= NODE_W
    a_hat = build_norm_adj(ei, num_nodes).astype(jnp.bfloat16)
    w1f, w_slab, p_slab = fold_params(params)

    # Precompute X @ W1' (K=2) in XLA; pack it with the pooling mask into one
    # lane-dense per-node slab.
    xw1 = x.astype(jnp.float32) @ w1f                     # (N, HID) f32
    mask = (batch[:, None] == jnp.arange(num_graphs)[None, :]).astype(jnp.float32)
    node = jnp.zeros((num_nodes, NODE_W), jnp.float32)
    node = node.at[:, 0:HID].set(xw1)
    node = node.at[:, HID:HID + num_graphs].set(mask)
    node = node.astype(jnp.bfloat16)

    vmem = pl.BlockSpec(memory_space=pltpu.MemorySpace.VMEM)
    fn = pl.pallas_call(
        gcn_tiny_kernel,
        out_shape=jax.ShapeDtypeStruct((num_graphs, 128), jnp.float32),
        in_specs=[vmem] * 4,
        out_specs=vmem,
    )
    # TODO(synk): for a real many-graph workload, add a leading batch grid axis
    # with dimension_semantics=("parallel",) to use both v7x TensorCores.
    out_pad = fn(a_hat, node, w_slab, p_slab)
    return out_pad[:, :2]


def reference_forward(params, x, ei, batch, num_graphs):
    # Faithful f32 / exact-GELU reference of the torch module (eval mode).
    a = build_norm_adj(ei, x.shape[0])
    gelu = lambda h: jax.nn.gelu(h, approximate=False)
    gcn = lambda h, w, b: a @ (h @ w) + b
    bn = lambda h, i: h * params["bn_scale"][i] + params["bn_shift"][i]

    h = gelu(bn(gcn(x.astype(jnp.float32), params["w1"], params["b_stack"][0]), 0))
    h = gelu(gcn(h, params["w_stack"][0], params["b_stack"][1]))
    h = gelu(bn(gcn(h, params["w_stack"][1], params["b_stack"][2]), 1))
    h = gelu(gcn(h, params["w_stack"][2], params["b_stack"][3]))
    h = gelu(bn(gcn(h, params["w_stack"][3], params["b_stack"][4]), 2))
    pooled = jax.ops.segment_max(h, batch, num_segments=num_graphs)
    z = pooled @ params["wl1"] + params["bl1"][0]
    return z @ params["wl2"] + params["bl2"][0]


# ----------------------------------------------------------------- main -----
if __name__ == "__main__":
    key = jax.random.PRNGKey(0)
    k_par, k_x, k_src, k_dst = jax.random.split(key, 4)

    params = init_params(k_par)
    x = jax.random.normal(k_x, (N, F_IN), jnp.float32)
    ei = jnp.stack([jax.random.randint(k_src, (E,), 0, N, jnp.int32),
                    jax.random.randint(k_dst, (E,), 0, N, jnp.int32)])   # (2, E)
    batch = jnp.concatenate([jnp.zeros(N // 2, jnp.int32),
                             jnp.ones(N - N // 2, jnp.int32)])           # (N,)

    out = gcn_tiny_forward(params, x, ei, batch, G)
    out = jax.block_until_ready(out)

    ref = reference_forward(params, x, ei, batch, G)
    assert out.shape == (G, 2)
    assert bool(jnp.all(jnp.isfinite(out)))
    # Tolerance accounts for bf16 MXU operands + tanh-approx GELU vs the exact
    # f32 reference (observed error is well below this).
    assert bool(jnp.allclose(out, ref, rtol=1e-2, atol=1e-2)), (out, ref)
    print("KERNEL_OK")
</pallas_src>

<mosaic_0001>
module attributes {stable_mosaic.version = 11 : i64} {
  func.func @gcn_tiny_kernel(%arg0: memref<64x64xbf16, #tpu.memory_space<vmem>>, %arg1: memref<64x64xbf16, #tpu.memory_space<vmem>>, %arg2: memref<32x256xbf16, #tpu.memory_space<vmem>>, %arg3: memref<8x128xf32, #tpu.memory_space<vmem>>, %arg4: memref<2x128xf32, #tpu.memory_space<vmem>>) attributes {dimension_semantics = [], scalar_prefetch = 0 : i64, scratch_operands = 0 : i64, tpu.core_type = #tpu.core_type<tc>} {
    %c0 = arith.constant 0 : index
    %c0_0 = arith.constant 0 : index
    %0 = vector.load %arg0[%c0, %c0_0] : memref<64x64xbf16, #tpu.memory_space<vmem>>, vector<64x64xbf16>
    %c0_1 = arith.constant 0 : index
    %c0_2 = arith.constant 0 : index
    %1 = vector.load %arg1[%c0_1, %c0_2] : memref<64x64xbf16, #tpu.memory_space<vmem>>, vector<64x32xbf16>
    %cst = arith.constant dense<0.000000e+00> : vector<64x32xf32>
    %2 = tpu.matmul %0, %1, %cst {dimension_numbers = #tpu.dot_dimension_numbers<[1], [0], [0], [1], [0, 0, 1, 1], [], []>} : vector<64x64xbf16>, vector<64x32xbf16>, vector<64x32xf32> -> vector<64x32xf32>
    %c0_3 = arith.constant 0 : index
    %c0_4 = arith.constant 0 : index
    %3 = vector.load %arg3[%c0_3, %c0_4] : memref<8x128xf32, #tpu.memory_space<vmem>>, vector<1x32xf32>
    %4 = vector.broadcast %3 : vector<1x32xf32> to vector<64x32xf32>
    %5 = arith.addf %2, %4 : vector<64x32xf32>
    %cst_5 = arith.constant 5.000000e-01 : f32
    %6 = vector.broadcast %cst_5 : f32 to vector<64x32xf32>
    %7 = arith.mulf %6, %5 : vector<64x32xf32>
    %cst_6 = arith.constant 4.471500e-02 : f32
    %8 = vector.broadcast %cst_6 : f32 to vector<64x32xf32>
    %9 = arith.mulf %8, %5 : vector<64x32xf32>
    %10 = arith.mulf %9, %5 : vector<64x32xf32>
    %11 = arith.mulf %10, %5 : vector<64x32xf32>
    %12 = arith.addf %5, %11 : vector<64x32xf32>
    %cst_7 = arith.constant 0.797884583 : f32
    %13 = vector.broadcast %cst_7 : f32 to vector<64x32xf32>
    %14 = arith.mulf %13, %12 : vector<64x32xf32>
    %15 = math.tanh %14 : vector<64x32xf32>
    %cst_8 = arith.constant 1.000000e+00 : f32
    %16 = vector.broadcast %cst_8 : f32 to vector<64x32xf32>
    %17 = arith.addf %16, %15 : vector<64x32xf32>
    %18 = arith.mulf %7, %17 : vector<64x32xf32>
    %c0_9 = arith.constant 0 : index
    %c0_10 = arith.constant 0 : index
    %19 = vector.load %arg2[%c0_9, %c0_10] : memref<32x256xbf16, #tpu.memory_space<vmem>>, vector<32x32xbf16>
    %20 = arith.truncf %18 : vector<64x32xf32> to vector<64x32xbf16>
    %cst_11 = arith.constant dense<0.000000e+00> : vector<64x32xf32>
    %21 = tpu.matmul %20, %19, %cst_11 {dimension_numbers = #tpu.dot_dimension_numbers<[1], [0], [0], [1], [0, 0, 1, 1], [], []>} : vector<64x32xbf16>, vector<32x32xbf16>, vector<64x32xf32> -> vector<64x32xf32>
    %22 = arith.truncf %21 : vector<64x32xf32> to vector<64x32xbf16>
    %cst_12 = arith.constant dense<0.000000e+00> : vector<64x32xf32>
    %23 = tpu.matmul %0, %22, %cst_12 {dimension_numbers = #tpu.dot_dimension_numbers<[1], [0], [0], [1], [0, 0, 1, 1], [], []>} : vector<64x64xbf16>, vector<64x32xbf16>, vector<64x32xf32> -> vector<64x32xf32>
    %c1 = arith.constant 1 : index
    %c0_13 = arith.constant 0 : index
    %24 = vector.load %arg3[%c1, %c0_13] : memref<8x128xf32, #tpu.memory_space<vmem>>, vector<1x32xf32>
    %25 = vector.broadcast %24 : vector<1x32xf32> to vector<64x32xf32>
    %26 = arith.addf %23, %25 : vector<64x32xf32>
    %cst_14 = arith.constant 5.000000e-01 : f32
    %27 = vector.broadcast %cst_14 : f32 to vector<64x32xf32>
    %28 = arith.mulf %27, %26 : vector<64x32xf32>
    %cst_15 = arith.constant 4.471500e-02 : f32
    %29 = vector.broadcast %cst_15 : f32 to vector<64x32xf32>
    %30 = arith.mulf %29, %26 : vector<64x32xf32>
    %31 = arith.mulf %30, %26 : vector<64x32xf32>
    %32 = arith.mulf %31, %26 : vector<64x32xf32>
    %33 = arith.addf %26, %32 : vector<64x32xf32>
    %cst_16 = arith.constant 0.797884583 : f32
    %34 = vector.broadcast %cst_16 : f32 to vector<64x32xf32>
    %35 = arith.mulf %34, %33 : vector<64x32xf32>
    %36 = math.tanh %35 : vector<64x32xf32>
    %cst_17 = arith.constant 1.000000e+00 : f32
    %37 = vector.broadcast %cst_17 : f32 to vector<64x32xf32>
    %38 = arith.addf %37, %36 : vector<64x32xf32>
    %39 = arith.mulf %28, %38 : vector<64x32xf32>
    %c0_18 = arith.constant 0 : index
    %c32 = arith.constant 32 : index
    %40 = vector.load %arg2[%c0_18, %c32] : memref<32x256xbf16, #tpu.memory_space<vmem>>, vector<32x32xbf16>
    %41 = arith.truncf %39 : vector<64x32xf32> to vector<64x32xbf16>
    %cst_19 = arith.constant dense<0.000000e+00> : vector<64x32xf32>
    %42 = tpu.matmul %41, %40, %cst_19 {dimension_numbers = #tpu.dot_dimension_numbers<[1], [0], [0], [1], [0, 0, 1, 1], [], []>} : vector<64x32xbf16>, vector<32x32xbf16>, vector<64x32xf32> -> vector<64x32xf32>
    %43 = arith.truncf %42 : vector<64x32xf32> to vector<64x32xbf16>
    %cst_20 = arith.constant dense<0.000000e+00> : vector<64x32xf32>
    %44 = tpu.matmul %0, %43, %cst_20 {dimension_numbers = #tpu.dot_dimension_numbers<[1], [0], [0], [1], [0, 0, 1, 1], [], []>} : vector<64x64xbf16>, vector<64x32xbf16>, vector<64x32xf32> -> vector<64x32xf32>
    %c2 = arith.constant 2 : index
    %c0_21 = arith.constant 0 : index
    %45 = vector.load %arg3[%c2, %c0_21] : memref<8x128xf32, #tpu.memory_space<vmem>>, vector<1x32xf32>
    %46 = vector.broadcast %45 : vector<1x32xf32> to vector<64x32xf32>
    %47 = arith.addf %44, %46 : vector<64x32xf32>
    %cst_22 = arith.constant 5.000000e-01 : f32
    %48 = vector.broadcast %cst_22 : f32 to vector<64x32xf32>
    %49 = arith.mulf %48, %47 : vector<64x32xf32>
    %cst_23 = arith.constant 4.471500e-02 : f32
    %50 = vector.broadcast %cst_23 : f32 to vector<64x32xf32>
    %51 = arith.mulf %50, %47 : vector<64x32xf32>
    %52 = arith.mulf %51, %47 : vector<64x32xf32>
    %53 = arith.mulf %52, %47 : vector<64x32xf32>
    %54 = arith.addf %47, %53 : vector<64x32xf32>
    %cst_24 = arith.constant 0.797884583 : f32
    %55 = vector.broadcast %cst_24 : f32 to vector<64x32xf32>
    %56 = arith.mulf %55, %54 : vector<64x32xf32>
    %57 = math.tanh %56 : vector<64x32xf32>
    %cst_25 = arith.constant 1.000000e+00 : f32
    %58 = vector.broadcast %cst_25 : f32 to vector<64x32xf32>
    %59 = arith.addf %58, %57 : vector<64x32xf32>
    %60 = arith.mulf %49, %59 : vector<64x32xf32>
    %c0_26 = arith.constant 0 : index
    %c64 = arith.constant 64 : index
    %61 = vector.load %arg2[%c0_26, %c64] : memref<32x256xbf16, #tpu.memory_space<vmem>>, vector<32x32xbf16>
    %62 = arith.truncf %60 : vector<64x32xf32> to vector<64x32xbf16>
    %cst_27 = arith.constant dense<0.000000e+00> : vector<64x32xf32>
    %63 = tpu.matmul %62, %61, %cst_27 {dimension_numbers = #tpu.dot_dimension_numbers<[1], [0], [0], [1], [0, 0, 1, 1], [], []>} : vector<64x32xbf16>, vector<32x32xbf16>, vector<64x32xf32> -> vector<64x32xf32>
    %64 = arith.truncf %63 : vector<64x32xf32> to vector<64x32xbf16>
    %cst_28 = arith.constant dense<0.000000e+00> : vector<64x32xf32>
    %65 = tpu.matmul %0, %64, %cst_28 {dimension_numbers = #tpu.dot_dimension_numbers<[1], [0], [0], [1], [0, 0, 1, 1], [], []>} : vector<64x64xbf16>, vector<64x32xbf16>, vector<64x32xf32> -> vector<64x32xf32>
    %c3 = arith.constant 3 : index
    %c0_29 = arith.constant 0 : index
    %66 = vector.load %arg3[%c3, %c0_29] : memref<8x128xf32, #tpu.memory_space<vmem>>, vector<1x32xf32>
    %67 = vector.broadcast %66 : vector<1x32xf32> to vector<64x32xf32>
    %68 = arith.addf %65, %67 : vector<64x32xf32>
    %cst_30 = arith.constant 5.000000e-01 : f32
    %69 = vector.broadcast %cst_30 : f32 to vector<64x32xf32>
    %70 = arith.mulf %69, %68 : vector<64x32xf32>
    %cst_31 = arith.constant 4.471500e-02 : f32
    %71 = vector.broadcast %cst_31 : f32 to vector<64x32xf32>
    %72 = arith.mulf %71, %68 : vector<64x32xf32>
    %73 = arith.mulf %72, %68 : vector<64x32xf32>
    %74 = arith.mulf %73, %68 : vector<64x32xf32>
    %75 = arith.addf %68, %74 : vector<64x32xf32>
    %cst_32 = arith.constant 0.797884583 : f32
    %76 = vector.broadcast %cst_32 : f32 to vector<64x32xf32>
    %77 = arith.mulf %76, %75 : vector<64x32xf32>
    %78 = math.tanh %77 : vector<64x32xf32>
    %cst_33 = arith.constant 1.000000e+00 : f32
    %79 = vector.broadcast %cst_33 : f32 to vector<64x32xf32>
    %80 = arith.addf %79, %78 : vector<64x32xf32>
    %81 = arith.mulf %70, %80 : vector<64x32xf32>
    %c0_34 = arith.constant 0 : index
    %c96 = arith.constant 96 : index
    %82 = vector.load %arg2[%c0_34, %c96] : memref<32x256xbf16, #tpu.memory_space<vmem>>, vector<32x32xbf16>
    %83 = arith.truncf %81 : vector<64x32xf32> to vector<64x32xbf16>
    %cst_35 = arith.constant dense<0.000000e+00> : vector<64x32xf32>
    %84 = tpu.matmul %83, %82, %cst_35 {dimension_numbers = #tpu.dot_dimension_numbers<[1], [0], [0], [1], [0, 0, 1, 1], [], []>} : vector<64x32xbf16>, vector<32x32xbf16>, vector<64x32xf32> -> vector<64x32xf32>
    %85 = arith.truncf %84 : vector<64x32xf32> to vector<64x32xbf16>
    %cst_36 = arith.constant dense<0.000000e+00> : vector<64x32xf32>
    %86 = tpu.matmul %0, %85, %cst_36 {dimension_numbers = #tpu.dot_dimension_numbers<[1], [0], [0], [1], [0, 0, 1, 1], [], []>} : vector<64x64xbf16>, vector<64x32xbf16>, vector<64x32xf32> -> vector<64x32xf32>
    %c4 = arith.constant 4 : index
    %c0_37 = arith.constant 0 : index
    %87 = vector.load %arg3[%c4, %c0_37] : memref<8x128xf32, #tpu.memory_space<vmem>>, vector<1x32xf32>
    %88 = vector.broadcast %87 : vector<1x32xf32> to vector<64x32xf32>
    %89 = arith.addf %86, %88 : vector<64x32xf32>
    %cst_38 = arith.constant 5.000000e-01 : f32
    %90 = vector.broadcast %cst_38 : f32 to vector<64x32xf32>
    %91 = arith.mulf %90, %89 : vector<64x32xf32>
    %cst_39 = arith.constant 4.471500e-02 : f32
    %92 = vector.broadcast %cst_39 : f32 to vector<64x32xf32>
    %93 = arith.mulf %92, %89 : vector<64x32xf32>
    %94 = arith.mulf %93, %89 : vector<64x32xf32>
    %95 = arith.mulf %94, %89 : vector<64x32xf32>
    %96 = arith.addf %89, %95 : vector<64x32xf32>
    %cst_40 = arith.constant 0.797884583 : f32
    %97 = vector.broadcast %cst_40 : f32 to vector<64x32xf32>
    %98 = arith.mulf %97, %96 : vector<64x32xf32>
    %99 = math.tanh %98 : vector<64x32xf32>
    %cst_41 = arith.constant 1.000000e+00 : f32
    %100 = vector.broadcast %cst_41 : f32 to vector<64x32xf32>
    %101 = arith.addf %100, %99 : vector<64x32xf32>
    %102 = arith.mulf %91, %101 : vector<64x32xf32>
    %c0_42 = arith.constant 0 : index
    %c32_43 = arith.constant 32 : index
    %103 = vector.load %arg1[%c0_42, %c32_43] : memref<64x64xbf16, #tpu.memory_space<vmem>>, vector<64x2xbf16>
    %104 = vector.extract_strided_slice %103 {offsets = [0, 0], sizes = [64, 1], strides = [1, 1]} : vector<64x2xbf16> to vector<64x1xbf16>
    %cst_44 = arith.constant 5.000000e-01 : bf16
    %105 = vector.broadcast %cst_44 : bf16 to vector<64x1xbf16>
    %106 = arith.cmpf ogt, %104, %105 : vector<64x1xbf16>
    %cst_45 = arith.constant -1.000000e+30 : f32
    %107 = vector.shape_cast %106 : vector<64x1xi1> to vector<64x1xi1>
    %108 = vector.broadcast %107 : vector<64x1xi1> to vector<64x32xi1>
    %109 = vector.broadcast %cst_45 : f32 to vector<64x32xf32>
    %110 = arith.select %108, %102, %109 : vector<64x32xi1>, vector<64x32xf32>
    %cst_46 = arith.constant dense<0xFF800000> : vector<32xf32>
    %111 = vector.multi_reduction <maximumf>, %110, %cst_46 [0] : vector<64x32xf32> to vector<32xf32>
    %112 = vector.shape_cast %111 : vector<32xf32> to vector<1x32xf32>
    %113 = vector.extract_strided_slice %103 {offsets = [0, 1], sizes = [64, 1], strides = [1, 1]} : vector<64x2xbf16> to vector<64x1xbf16>
    %cst_47 = arith.constant 5.000000e-01 : bf16
    %114 = vector.broadcast %cst_47 : bf16 to vector<64x1xbf16>
    %115 = arith.cmpf ogt, %113, %114 : vector<64x1xbf16>
    %cst_48 = arith.constant -1.000000e+30 : f32
    %116 = vector.shape_cast %115 : vector<64x1xi1> to vector<64x1xi1>
    %117 = vector.broadcast %116 : vector<64x1xi1> to vector<64x32xi1>
    %118 = vector.broadcast %cst_48 : f32 to vector<64x32xf32>
    %119 = arith.select %117, %102, %118 : vector<64x32xi1>, vector<64x32xf32>
    %cst_49 = arith.constant dense<0xFF800000> : vector<32xf32>
    %120 = vector.multi_reduction <maximumf>, %119, %cst_49 [0] : vector<64x32xf32> to vector<32xf32>
    %121 = vector.shape_cast %120 : vector<32xf32> to vector<1x32xf32>
    %122 = tpu.concatenate %112, %121 in 0 : vector<1x32xf32>, vector<1x32xf32> -> vector<2x32xf32>
    %123 = arith.truncf %122 : vector<2x32xf32> to vector<2x32xbf16>
    %c0_50 = arith.constant 0 : index
    %c128 = arith.constant 128 : index
    %124 = vector.load %arg2[%c0_50, %c128] : memref<32x256xbf16, #tpu.memory_space<vmem>>, vector<32x128xbf16>
    %cst_51 = arith.constant dense<0.000000e+00> : vector<2x128xf32>
    %125 = tpu.matmul %123, %124, %cst_51 {dimension_numbers = #tpu.dot_dimension_numbers<[1], [0], [0], [1], [0, 0, 1, 1], [], []>} : vector<2x32xbf16>, vector<32x128xbf16>, vector<2x128xf32> -> vector<2x128xf32>
    %c5 = arith.constant 5 : index
    %c0_52 = arith.constant 0 : index
    %126 = vector.load %arg3[%c5, %c0_52] : memref<8x128xf32, #tpu.memory_space<vmem>>, vector<1x128xf32>
    %127 = vector.broadcast %126 : vector<1x128xf32> to vector<2x128xf32>
    %128 = arith.addf %125, %127 : vector<2x128xf32>
    %c0_53 = arith.constant 0 : index
    %c0_54 = arith.constant 0 : index
    %129 = vector.load %arg4[%c0_53, %c0_54] : memref<2x128xf32, #tpu.memory_space<vmem>>, vector<2x128xf32>
    tpu.vector_store %arg4[%c0_53, %c0_54], %128 {strides = array<i32>} : memref<2x128xf32, #tpu.memory_space<vmem>>, vector<2x128xf32>,
    return
  }
}

</mosaic_0001>

<llo_original>
// kernel: tpu_custom_call.1
$region0: #{tpu_custom_call.1}
  #allocation0 [shape = 'u32[]', space=smem, size = 0x4, offset = 0x4, fixed_abs, tag = 'smem constant byte address 0x4 - core index']
  #allocation1 [shape = 'u32[72,128]{1,0:T(1,128)}', space=vmem, size = 0x9000, scoped, tag = 'internal scratch']
  %s0 = inlined_call_operand.hbm [shape: bf16[64,64], index: 0, kind: input, shape index: {}]
  %s1 = inlined_call_operand.hbm [shape: bf16[64,64], index: 1, kind: input, shape index: {}]
  %s2 = inlined_call_operand.hbm [shape: bf16[32,256], index: 2, kind: input, shape index: {}]
  %s3 = inlined_call_operand.hbm [shape: f32[8,128], index: 3, kind: input, shape index: {}]
  %s4 = inlined_call_operand.hbm [shape: f32[2,128], index: 4, kind: output, shape index: {}]
  %s5 = sld [smem:[#allocation0]]
  $region42: #{tpu_custom_call.1} parent=0
    _
  %s7 = ssub.s32 1, %s5
  %s8 = scalar_select 0, %s7, %s5
  $region1: #{tpu_custom_call.1} parent=0
    #allocation2 [shape = 'u8[16384]{0}', space=vmem, size = 0x4000, scoped, tag = 'input window, operand 0, single buffered']
    #allocation3 [shape = 's32[1]{0}', space=sflag, size = 0x4, scoped, tag = 'scoped memory for tpu_custom_call.1']
    #allocation4 [shape = 's32[1]{0}', space=sflag, size = 0x4, scoped, tag = 'scoped memory for tpu_custom_call.1']
    #allocation5 [shape = 'u8[16384]{0}', space=vmem, size = 0x4000, scoped, tag = 'input window, operand 1, single buffered']
    #allocation6 [shape = 's32[1]{0}', space=sflag, size = 0x4, scoped, tag = 'scoped memory for tpu_custom_call.1']
    #allocation7 [shape = 'u8[16384]{0}', space=vmem, size = 0x4000, scoped, tag = 'input window, operand 2, single buffered']
    #allocation8 [shape = 'u8[4096]{0}', space=vmem, size = 0x1000, scoped, tag = 'input window, operand 3, single buffered']
    #allocation9 [shape = 's32[1]{0}', space=sflag, size = 0x4, scoped, tag = 'scoped memory for tpu_custom_call.1']
    #allocation10 [shape = 'u8[1024]{0}', space=vmem, size = 0x400, scoped, tag = 'output window, operand 0, single buffered']
    %9 = vsyncpa [#allocation3], 0
    %10 = vsyncpa [#allocation6], 0
    %11 = vsyncpa [#allocation9], 0
    %12 = vsyncpa [#allocation4], 0
    // Predicated region
    $region2: #{tpu_custom_call.1} parent=1 // pred_check
      _
    $region3: #{tpu_custom_call.1} parent=1 // pred_check_branch
      %14 = sbr.rel (0) target = $region5
    $region4: #{tpu_custom_call.1} parent=1 // pred_region
      %16 = vsyncadd [#allocation3], 0
      %s17 = sshll.u32 %s0, 4
      %s18 = int_to_ptr.hbm [resolvable:$true] %s17
      %s19 = sshll.u32 [#allocation2], 4
      %s20 = int_to_ptr.vmem [resolvable:$true] %s19
      %25 = dma.hbm_to_vmem [thread:$0]  %s18, 512, %s20, [#allocation3], 64, 64, 4
    $region5: #{tpu_custom_call.1} parent=1 // pred_fallthru
      _
    // Predicated region
    $region6: #{tpu_custom_call.1} parent=1 // pred_check
      _
    $region7: #{tpu_custom_call.1} parent=1 // pred_check_branch
      %27 = sbr.rel (0) target = $region9
    $region8: #{tpu_custom_call.1} parent=1 // pred_region
      %29 = vsyncadd [#allocation6], 0
      %s30 = sshll.u32 %s1, 4
      %s31 = int_to_ptr.hbm [resolvable:$true] %s30
      %s32 = sshll.u32 [#allocation5], 4
      %s33 = int_to_ptr.vmem [resolvable:$true] %s32
      %38 = dma.hbm_to_vmem [thread:$0]  %s31, 512, %s33, [#allocation6], 64, 64, 4
    $region9: #{tpu_custom_call.1} parent=1 // pred_fallthru
      _
    // Predicated region
    $region10: #{tpu_custom_call.1} parent=1 // pred_check
      _
    $region11: #{tpu_custom_call.1} parent=1 // pred_check_branch
      %40 = sbr.rel (0) target = $region13
    $region12: #{tpu_custom_call.1} parent=1 // pred_region
      %42 = vsyncadd [#allocation6], 0
      %s43 = sshll.u32 %s2, 4
      %s44 = int_to_ptr.hbm [resolvable:$true] %s43
      %s45 = sshll.u32 [#allocation7], 4
      %s46 = int_to_ptr.vmem [resolvable:$true] %s45
      %51 = dma.hbm_to_vmem [thread:$0]  %s44, 512, %s46, [#allocation6], 128, 128, 8
    $region13: #{tpu_custom_call.1} parent=1 // pred_fallthru
      _
    // Predicated region
    $region14: #{tpu_custom_call.1} parent=1 // pred_check
      _
    $region15: #{tpu_custom_call.1} parent=1 // pred_check_branch
      %53 = sbr.rel (0) target = $region17
    $region16: #{tpu_custom_call.1} parent=1 // pred_region
      %55 = vsyncadd [#allocation9], 0
      %s57 = sshll.u32 %s3, 4
      %s58 = int_to_ptr.hbm [resolvable:$true] %s57
      %s59 = sshll.u32 [#allocation8], 4
      %s60 = int_to_ptr.vmem [resolvable:$true] %s59
      %62 = dma.hbm_to_vmem [thread:$0]  %s58, 128, %s60, [#allocation9]
    $region17: #{tpu_custom_call.1} parent=1 // pred_fallthru
      _
    // Predicated region
    $region18: #{tpu_custom_call.1} parent=1 // pred_check
      _
    $region19: #{tpu_custom_call.1} parent=1 // pred_check_branch
      %64 = sbr.rel (0) target = $region21
    $region20: #{tpu_custom_call.1} parent=1 // pred_region
      %66 = dma.done [#allocation3], 512
    $region21: #{tpu_custom_call.1} parent=1 // pred_fallthru
      _
    // Predicated region
    $region22: #{tpu_custom_call.1} parent=1 // pred_check
      _
    $region23: #{tpu_custom_call.1} parent=1 // pred_check_branch
      %68 = sbr.rel (0) target = $region25
    $region24: #{tpu_custom_call.1} parent=1 // pred_region
      %70 = dma.done [#allocation6], 512
    $region25: #{tpu_custom_call.1} parent=1 // pred_fallthru
      _
    // Predicated region
    $region26: #{tpu_custom_call.1} parent=1 // pred_check
      _
    $region27: #{tpu_custom_call.1} parent=1 // pred_check_branch
      %72 = sbr.rel (0) target = $region29
    $region28: #{tpu_custom_call.1} parent=1 // pred_region
      %74 = dma.done [#allocation6], 512
    $region29: #{tpu_custom_call.1} parent=1 // pred_fallthru
      _
    // Predicated region
    $region30: #{tpu_custom_call.1} parent=1 // pred_check
      _
    $region31: #{tpu_custom_call.1} parent=1 // pred_check_branch
      %76 = sbr.rel (0) target = $region33
    $region32: #{tpu_custom_call.1} parent=1 // pred_region
      %78 = dma.done [#allocation9], 128
    $region33: #{tpu_custom_call.1} parent=1 // pred_fallthru
      _
    %v80 = vld [vmem:[#allocation2] sm:$0xf]
    %v81 = vld [vmem:[#allocation2 + $0x4] sm:$0xf]
    %v82 = vld [vmem:[#allocation2 + $0x8] sm:$0xf]
    %v83 = vld [vmem:[#allocation2 + $0xc] sm:$0xf]
    %v84 = vld [vmem:[#allocation2 + $0x10] sm:$0xf]
    %v85 = vld [vmem:[#allocation2 + $0x14] sm:$0xf]
    %v86 = vld [vmem:[#allocation2 + $0x18] sm:$0xf]
    %v87 = vld [vmem:[#allocation2 + $0x1c] sm:$0xf]
    %v88 = vld [vmem:[#allocation5] sm:$0xf]
    %v89 = vld [vmem:[#allocation5 + $0x4] sm:$0xf]
    %v90 = vld [vmem:[#allocation5 + $0x8] sm:$0xf]
    %v91 = vld [vmem:[#allocation5 + $0xc] sm:$0xf]
    %v92 = vld [vmem:[#allocation5 + $0x10] sm:$0xf]
    %v93 = vld [vmem:[#allocation5 + $0x14] sm:$0xf]
    %v94 = vld [vmem:[#allocation5 + $0x18] sm:$0xf]
    %v95 = vld [vmem:[#allocation5 + $0x1c] sm:$0xf]
    %v96 = vld [vmem:[#allocation8] sm:$0x1]
    %v97 = vperm.slane %v96, 0
    %v106 = vunpack.c.l.b16 %v80
    %v107 = vunpack.c.l.b16 %v81
    %v108 = vunpack.c.l.b16 %v82
    %v109 = vunpack.c.l.b16 %v83
    %v110 = vunpack.c.l.b16 %v84
    %v111 = vunpack.c.l.b16 %v85
    %v112 = vunpack.c.l.b16 %v86
    %v113 = vunpack.c.l.b16 %v87
    %v114 = vpack.c.b16 %v107, %v106
    %v115 = vpack.c.b16 %v109, %v108
    %v116 = vpack.c.b16 %v111, %v110
    %v117 = vpack.c.b16 %v113, %v112
    %v126 = vunpack.c.l.b16 %v88
    %v127 = vunpack.c.l.b16 %v89
    %v128 = vunpack.c.l.b16 %v90
    %v129 = vunpack.c.l.b16 %v91
    %v130 = vunpack.c.l.b16 %v92
    %v131 = vunpack.c.l.b16 %v93
    %v132 = vunpack.c.l.b16 %v94
    %v133 = vunpack.c.l.b16 %v95
    %v134 = vpack.c.b16 %v127, %v126
    %v135 = vpack.c.b16 %v129, %v128
    %v136 = vpack.c.b16 %v131, %v130
    %v137 = vpack.c.b16 %v133, %v132
    %vm142 = vcmask 523264
    %v144 = vsel %vm142, %v114, 0
    %v147 = vsel %vm142, %v115, 0
    %v150 = vsel %vm142, %v116, 0
    %v153 = vsel %vm142, %v117, 0
    %155 = vmatpush.bf16.msra.mxu0 0
    %156 = vmatpush.bf16.msra.mxu0 0
    %157 = vmatpush.bf16.msra.mxu0 0
    %158 = vmatpush.bf16.msra.mxu0 0
    %159 = vmatpush.bf16.msra.mxu0 %v137
    %160 = vmatpush.bf16.msra.mxu0 %v136
    %161 = vmatpush.bf16.msra.mxu0 %v135
    %162 = vmatpush.bf16.msra.mxu0 %v134
    %163 = vmatmul.bf16.gmra.mxu0 %v144
    %v164 = vpop.f32.mrf.mxu0
    %v165 = vadd.f32 %v97, %v164
    %v166 = vpop.f32.mrf.mxu0
    %v167 = vadd.f32 %v97, %v166
    %168 = vmatmul.bf16.gmra.mxu0 %v147
    %v169 = vpop.f32.mrf.mxu0
    %v170 = vadd.f32 %v97, %v169
    %v171 = vpop.f32.mrf.mxu0
    %v172 = vadd.f32 %v97, %v171
    %173 = vmatmul.bf16.gmra.mxu0 %v150
    %v174 = vpop.f32.mrf.mxu0
    %v175 = vadd.f32 %v97, %v174
    %v176 = vpop.f32.mrf.mxu0
    %v177 = vadd.f32 %v97, %v176
    %178 = vmatmul.bf16.gmra.mxu0 %v153
    %v179 = vpop.f32.mrf.mxu0
    %v180 = vadd.f32 %v97, %v179
    %v181 = vpop.f32.mrf.mxu0
    %v182 = vadd.f32 %v97, %v181
    %183 = vdwg.mxu0
    %v184 = vmul.f32 %v165, 0.5
    %v185 = vmul.f32 %v167, 0.5
    %v186 = vmul.f32 %v170, 0.5
    %v187 = vmul.f32 %v172, 0.5
    %v188 = vmul.f32 %v175, 0.5
    %v189 = vmul.f32 %v177, 0.5
    %v190 = vmul.f32 %v180, 0.5
    %v191 = vmul.f32 %v182, 0.5
    %v192 = vmul.f32 %v165, 0.044715
    %v193 = vmul.f32 %v167, 0.044715
    %v194 = vmul.f32 %v170, 0.044715
    %v195 = vmul.f32 %v172, 0.044715
    %v196 = vmul.f32 %v175, 0.044715
    %v197 = vmul.f32 %v177, 0.044715
    %v198 = vmul.f32 %v180, 0.044715
    %v199 = vmul.f32 %v182, 0.044715
    %v200 = vmul.f32 %v192, %v165
    %v201 = vmul.f32 %v193, %v167
    %v202 = vmul.f32 %v194, %v170
    %v203 = vmul.f32 %v195, %v172
    %v204 = vmul.f32 %v196, %v175
    %v205 = vmul.f32 %v197, %v177
    %v206 = vmul.f32 %v198, %v180
    %v207 = vmul.f32 %v199, %v182
    %v208 = vmul.f32 %v200, %v165
    %v209 = vmul.f32 %v201, %v167
    %v210 = vmul.f32 %v202, %v170
    %v211 = vmul.f32 %v203, %v172
    %v212 = vmul.f32 %v204, %v175
    %v213 = vmul.f32 %v205, %v177
    %v214 = vmul.f32 %v206, %v180
    %v215 = vmul.f32 %v207, %v182
    %v216 = vadd.f32 %v165, %v208
    %v217 = vadd.f32 %v167, %v209
    %v218 = vadd.f32 %v170, %v210
    %v219 = vadd.f32 %v172, %v211
    %v220 = vadd.f32 %v175, %v212
    %v221 = vadd.f32 %v177, %v213
    %v222 = vadd.f32 %v180, %v214
    %v223 = vadd.f32 %v182, %v215
    %v224 = vmul.f32 %v216, 0.7978846
    %v225 = vmul.f32 %v217, 0.7978846
    %v226 = vmul.f32 %v218, 0.7978846
    %v227 = vmul.f32 %v219, 0.7978846
    %v228 = vmul.f32 %v220, 0.7978846
    %v229 = vmul.f32 %v221, 0.7978846
    %v230 = vmul.f32 %v222, 0.7978846
    %v231 = vmul.f32 %v223, 0.7978846
    %v232 = vtanh.pop %v224
    %v233 = vtanh.pop %v225
    %v234 = vtanh.pop %v226
    %v235 = vtanh.pop %v227
    %v236 = vtanh.pop %v228
    %v237 = vtanh.pop %v229
    %v238 = vtanh.pop %v230
    %v239 = vtanh.pop %v231
    %v240 = vadd.f32 %v232, 1.0
    %v241 = vadd.f32 %v233, 1.0
    %v242 = vadd.f32 %v234, 1.0
    %v243 = vadd.f32 %v235, 1.0
    %v244 = vadd.f32 %v236, 1.0
    %v245 = vadd.f32 %v237, 1.0
    %v246 = vadd.f32 %v238, 1.0
    %v247 = vadd.f32 %v239, 1.0
    %v248 = vmul.f32 %v184, %v240
    %v249 = vmul.f32 %v185, %v241
    %v250 = vmul.f32 %v186, %v242
    %v251 = vmul.f32 %v187, %v243
    %v252 = vmul.f32 %v188, %v244
    %v253 = vmul.f32 %v189, %v245
    %v254 = vmul.f32 %v190, %v246
    %v255 = vmul.f32 %v191, %v247
    %v256 = vld [vmem:[#allocation7] sm:$0xf]
    %v257 = vld [vmem:[#allocation7 + $0x8] sm:$0xf]
    %v258 = vld [vmem:[#allocation7 + $0x10] sm:$0xf]
    %v259 = vld [vmem:[#allocation7 + $0x18] sm:$0xf]
    %v260 = vpack.c.bf16 %v249, %v248
    %v261 = vpack.c.bf16 %v251, %v250
    %v262 = vpack.c.bf16 %v253, %v252
    %v263 = vpack.c.bf16 %v255, %v254
    %v268 = vunpack.c.l.b16 %v256
    %v269 = vunpack.c.l.b16 %v257
    %v270 = vunpack.c.l.b16 %v258
    %v271 = vunpack.c.l.b16 %v259
    %v272 = vpack.c.b16 %v269, %v268
    %v273 = vpack.c.b16 %v271, %v270
    %vm276 = vcmask 261120
    %v278 = vsel %vm276, %v260, 0
    %v281 = vsel %vm276, %v261, 0
    %v284 = vsel %vm276, %v262, 0
    %v287 = vsel %vm276, %v263, 0
    %289 = vmatpush.bf16.msra.mxu0 0
    %290 = vmatpush.bf16.msra.mxu0 0
    %291 = vmatpush.bf16.msra.mxu0 0
    %292 = vmatpush.bf16.msra.mxu0 0
    %293 = vmatpush.bf16.msra.mxu0 0
    %294 = vmatpush.bf16.msra.mxu0 0
    %295 = vmatpush.bf16.msra.mxu0 %v273
    %296 = vmatpush.bf16.msra.mxu0 %v272
    %297 = vmatmul.bf16.gmra.mxu0 %v278
    %v298 = vpop.f32.mrf.mxu0
    %v299 = vadd.f32 0.0, %v298
    %v300 = vpop.f32.mrf.mxu0
    %v301 = vadd.f32 0.0, %v300
    %302 = vmatmul.bf16.gmra.mxu0 %v281
    %v303 = vpop.f32.mrf.mxu0
    %v304 = vadd.f32 0.0, %v303
    %v305 = vpop.f32.mrf.mxu0
    %v306 = vadd.f32 0.0, %v305
    %307 = vmatmul.bf16.gmra.mxu0 %v284
    %v308 = vpop.f32.mrf.mxu0
    %v309 = vadd.f32 0.0, %v308
    %v310 = vpop.f32.mrf.mxu0
    %v311 = vadd.f32 0.0, %v310
    %312 = vmatmul.bf16.gmra.mxu0 %v287
    %v313 = vpop.f32.mrf.mxu0
    %v314 = vadd.f32 0.0, %v313
    %v315 = vpop.f32.mrf.mxu0
    %v316 = vadd.f32 0.0, %v315
    %317 = vdwg.mxu0
    %v318 = vpack.c.bf16 %v301, %v299
    %v319 = vpack.c.bf16 %v306, %v304
    %v320 = vpack.c.bf16 %v311, %v309
    %v321 = vpack.c.bf16 %v316, %v314
    %v322 = vld [vmem:[#allocation8 + $0x1] sm:$0x1]
    %v323 = vperm.slane %v322, 0
    %324 = vmatpush.bf16.msra.mxu0 0
    %325 = vmatpush.bf16.msra.mxu0 0
    %326 = vmatpush.bf16.msra.mxu0 0
    %327 = vmatpush.bf16.msra.mxu0 0
    %328 = vmatpush.bf16.msra.mxu0 %v321
    %329 = vmatpush.bf16.msra.mxu0 %v320
    %330 = vmatpush.bf16.msra.mxu0 %v319
    %331 = vmatpush.bf16.msra.mxu0 %v318
    %332 = vmatmul.bf16.gmra.mxu0 %v144
    %v333 = vpop.f32.mrf.mxu0
    %v334 = vadd.f32 %v323, %v333
    %v335 = vpop.f32.mrf.mxu0
    %v336 = vadd.f32 %v323, %v335
    %337 = vmatmul.bf16.gmra.mxu0 %v147
    %v338 = vpop.f32.mrf.mxu0
    %v339 = vadd.f32 %v323, %v338
    %v340 = vpop.f32.mrf.mxu0
    %v341 = vadd.f32 %v323, %v340
    %342 = vmatmul.bf16.gmra.mxu0 %v150
    %v343 = vpop.f32.mrf.mxu0
    %v344 = vadd.f32 %v323, %v343
    %v345 = vpop.f32.mrf.mxu0
    %v346 = vadd.f32 %v323, %v345
    %347 = vmatmul.bf16.gmra.mxu0 %v153
    %v348 = vpop.f32.mrf.mxu0
    %v349 = vadd.f32 %v323, %v348
    %v350 = vpop.f32.mrf.mxu0
    %v351 = vadd.f32 %v323, %v350
    %352 = vdwg.mxu0
    %v353 = vmul.f32 %v334, 0.5
    %v354 = vmul.f32 %v336, 0.5
    %v355 = vmul.f32 %v339, 0.5
    %v356 = vmul.f32 %v341, 0.5
    %v357 = vmul.f32 %v344, 0.5
    %v358 = vmul.f32 %v346, 0.5
    %v359 = vmul.f32 %v349, 0.5
    %v360 = vmul.f32 %v351, 0.5
    %v361 = vmul.f32 %v334, 0.044715
    %v362 = vmul.f32 %v336, 0.044715
    %v363 = vmul.f32 %v339, 0.044715
    %v364 = vmul.f32 %v341, 0.044715
    %v365 = vmul.f32 %v344, 0.044715
    %v366 = vmul.f32 %v346, 0.044715
    %v367 = vmul.f32 %v349, 0.044715
    %v368 = vmul.f32 %v351, 0.044715
    %v369 = vmul.f32 %v361, %v334
    %v370 = vmul.f32 %v362, %v336
    %v371 = vmul.f32 %v363, %v339
    %v372 = vmul.f32 %v364, %v341
    %v373 = vmul.f32 %v365, %v344
    %v374 = vmul.f32 %v366, %v346
    %v375 = vmul.f32 %v367, %v349
    %v376 = vmul.f32 %v368, %v351
    %v377 = vmul.f32 %v369, %v334
    %v378 = vmul.f32 %v370, %v336
    %v379 = vmul.f32 %v371, %v339
    %v380 = vmul.f32 %v372, %v341
    %v381 = vmul.f32 %v373, %v344
    %v382 = vmul.f32 %v374, %v346
    %v383 = vmul.f32 %v375, %v349
    %v384 = vmul.f32 %v376, %v351
    %v385 = vadd.f32 %v334, %v377
    %v386 = vadd.f32 %v336, %v378
    %v387 = vadd.f32 %v339, %v379
    %v388 = vadd.f32 %v341, %v380
    %v389 = vadd.f32 %v344, %v381
    %v390 = vadd.f32 %v346, %v382
    %v391 = vadd.f32 %v349, %v383
    %v392 = vadd.f32 %v351, %v384
    %v393 = vmul.f32 %v385, 0.7978846
    %v394 = vmul.f32 %v386, 0.7978846
    %v395 = vmul.f32 %v387, 0.7978846
    %v396 = vmul.f32 %v388, 0.7978846
    %v397 = vmul.f32 %v389, 0.7978846
    %v398 = vmul.f32 %v390, 0.7978846
    %v399 = vmul.f32 %v391, 0.7978846
    %v400 = vmul.f32 %v392, 0.7978846
    %v401 = vtanh.pop %v393
    %v402 = vtanh.pop %v394
    %v403 = vtanh.pop %v395
    %v404 = vtanh.pop %v396
    %v405 = vtanh.pop %v397
    %v406 = vtanh.pop %v398
    %v407 = vtanh.pop %v399
    %v408 = vtanh.pop %v400
    %v409 = vadd.f32 %v401, 1.0
    %v410 = vadd.f32 %v402, 1.0
    %v411 = vadd.f32 %v403, 1.0
    %v412 = vadd.f32 %v404, 1.0
    %v413 = vadd.f32 %v405, 1.0
    %v414 = vadd.f32 %v406, 1.0
    %v415 = vadd.f32 %v407, 1.0
    %v416 = vadd.f32 %v408, 1.0
    %v417 = vmul.f32 %v353, %v409
    %v418 = vmul.f32 %v354, %v410
    %v419 = vmul.f32 %v355, %v411
    %v420 = vmul.f32 %v356, %v412
    %v421 = vmul.f32 %v357, %v413
    %v422 = vmul.f32 %v358, %v414
    %v423 = vmul.f32 %v359, %v415
    %v424 = vmul.f32 %v360, %v416
    %v425 = vpack.c.bf16 %v418, %v417
    %v426 = vpack.c.bf16 %v420, %v419
    %v427 = vpack.c.bf16 %v422, %v421
    %v428 = vpack.c.bf16 %v424, %v423
    %429 = vrot.lane.b32.xlu0 %v272, 96
    %v430 = vpop.permute.xlu0 %429
    %431 = vrot.lane.b32.xlu0 %v273, 96
    %v432 = vpop.permute.xlu0 %431
    %v436 = vsel %vm276, %v425, 0
    %v439 = vsel %vm276, %v426, 0
    %v442 = vsel %vm276, %v427, 0
    %v445 = vsel %vm276, %v428, 0
    %447 = vmatpush.bf16.msra.mxu0 0
    %448 = vmatpush.bf16.msra.mxu0 0
    %449 = vmatpush.bf16.msra.mxu0 0
    %450 = vmatpush.bf16.msra.mxu0 0
    %451 = vmatpush.bf16.msra.mxu0 0
    %452 = vmatpush.bf16.msra.mxu0 0
    %453 = vmatpush.bf16.msra.mxu0 %v432
    %454 = vmatpush.bf16.msra.mxu0 %v430
    %455 = vmatmul.bf16.gmra.mxu0 %v436
    %v456 = vpop.f32.mrf.mxu0
    %v457 = vadd.f32 0.0, %v456
    %v458 = vpop.f32.mrf.mxu0
    %v459 = vadd.f32 0.0, %v458
    %460 = vmatmul.bf16.gmra.mxu0 %v439
    %v461 = vpop.f32.mrf.mxu0
    %v462 = vadd.f32 0.0, %v461
    %v463 = vpop.f32.mrf.mxu0
    %v464 = vadd.f32 0.0, %v463
    %465 = vmatmul.bf16.gmra.mxu0 %v442
    %v466 = vpop.f32.mrf.mxu0
    %v467 = vadd.f32 0.0, %v466
    %v468 = vpop.f32.mrf.mxu0
    %v469 = vadd.f32 0.0, %v468
    %470 = vmatmul.bf16.gmra.mxu0 %v445
    %v471 = vpop.f32.mrf.mxu0
    %v472 = vadd.f32 0.0, %v471
    %v473 = vpop.f32.mrf.mxu0
    %v474 = vadd.f32 0.0, %v473
    %475 = vdwg.mxu0
    %v476 = vpack.c.bf16 %v459, %v457
    %v477 = vpack.c.bf16 %v464, %v462
    %v478 = vpack.c.bf16 %v469, %v467
    %v479 = vpack.c.bf16 %v474, %v472
    %v480 = vld [vmem:[#allocation8 + $0x2] sm:$0x1]
    %v481 = vperm.slane %v480, 0
    %482 = vmatpush.bf16.msra.mxu0 0
    %483 = vmatpush.bf16.msra.mxu0 0
    %484 = vmatpush.bf16.msra.mxu0 0
    %485 = vmatpush.bf16.msra.mxu0 0
    %486 = vmatpush.bf16.msra.mxu0 %v479
    %487 = vmatpush.bf16.msra.mxu0 %v478
    %488 = vmatpush.bf16.msra.mxu0 %v477
    %489 = vmatpush.bf16.msra.mxu0 %v476
    %490 = vmatmul.bf16.gmra.mxu0 %v144
    %v491 = vpop.f32.mrf.mxu0
    %v492 = vadd.f32 %v481, %v491
    %v493 = vpop.f32.mrf.mxu0
    %v494 = vadd.f32 %v481, %v493
    %495 = vmatmul.bf16.gmra.mxu0 %v147
    %v496 = vpop.f32.mrf.mxu0
    %v497 = vadd.f32 %v481, %v496
    %v498 = vpop.f32.mrf.mxu0
    %v499 = vadd.f32 %v481, %v498
    %500 = vmatmul.bf16.gmra.mxu0 %v150
    %v501 = vpop.f32.mrf.mxu0
    %v502 = vadd.f32 %v481, %v501
    %v503 = vpop.f32.mrf.mxu0
    %v504 = vadd.f32 %v481, %v503
    %505 = vmatmul.bf16.gmra.mxu0 %v153
    %v506 = vpop.f32.mrf.mxu0
    %v507 = vadd.f32 %v481, %v506
    %v508 = vpop.f32.mrf.mxu0
    %v509 = vadd.f32 %v481, %v508
    %510 = vdwg.mxu0
    %v511 = vmul.f32 %v492, 0.5
    %v512 = vmul.f32 %v494, 0.5
    %v513 = vmul.f32 %v497, 0.5
    %v514 = vmul.f32 %v499, 0.5
    %v515 = vmul.f32 %v502, 0.5
    %v516 = vmul.f32 %v504, 0.5
    %v517 = vmul.f32 %v507, 0.5
    %v518 = vmul.f32 %v509, 0.5
    %v519 = vmul.f32 %v492, 0.044715
    %v520 = vmul.f32 %v494, 0.044715
    %v521 = vmul.f32 %v497, 0.044715
    %v522 = vmul.f32 %v499, 0.044715
    %v523 = vmul.f32 %v502, 0.044715
    %v524 = vmul.f32 %v504, 0.044715
    %v525 = vmul.f32 %v507, 0.044715
    %v526 = vmul.f32 %v509, 0.044715
    %v527 = vmul.f32 %v519, %v492
    %v528 = vmul.f32 %v520, %v494
    %v529 = vmul.f32 %v521, %v497
    %v530 = vmul.f32 %v522, %v499
    %v531 = vmul.f32 %v523, %v502
    %v532 = vmul.f32 %v524, %v504
    %v533 = vmul.f32 %v525, %v507
    %v534 = vmul.f32 %v526, %v509
    %v535 = vmul.f32 %v527, %v492
    %v536 = vmul.f32 %v528, %v494
    %v537 = vmul.f32 %v529, %v497
    %v538 = vmul.f32 %v530, %v499
    %v539 = vmul.f32 %v531, %v502
    %v540 = vmul.f32 %v532, %v504
    %v541 = vmul.f32 %v533, %v507
    %v542 = vmul.f32 %v534, %v509
    %v543 = vadd.f32 %v492, %v535
    %v544 = vadd.f32 %v494, %v536
    %v545 = vadd.f32 %v497, %v537
    %v546 = vadd.f32 %v499, %v538
    %v547 = vadd.f32 %v502, %v539
    %v548 = vadd.f32 %v504, %v540
    %v549 = vadd.f32 %v507, %v541
    %v550 = vadd.f32 %v509, %v542
    %v551 = vmul.f32 %v543, 0.7978846
    %v552 = vmul.f32 %v544, 0.7978846
    %v553 = vmul.f32 %v545, 0.7978846
    %v554 = vmul.f32 %v546, 0.7978846
    %v555 = vmul.f32 %v547, 0.7978846
    %v556 = vmul.f32 %v548, 0.7978846
    %v557 = vmul.f32 %v549, 0.7978846
    %v558 = vmul.f32 %v550, 0.7978846
    %v559 = vtanh.pop %v551
    %v560 = vtanh.pop %v552
    %v561 = vtanh.pop %v553
    %v562 = vtanh.pop %v554
    %v563 = vtanh.pop %v555
    %v564 = vtanh.pop %v556
    %v565 = vtanh.pop %v557
    %v566 = vtanh.pop %v558
    %v567 = vadd.f32 %v559, 1.0
    %v568 = vadd.f32 %v560, 1.0
    %v569 = vadd.f32 %v561, 1.0
    %v570 = vadd.f32 %v562, 1.0
    %v571 = vadd.f32 %v563, 1.0
    %v572 = vadd.f32 %v564, 1.0
    %v573 = vadd.f32 %v565, 1.0
    %v574 = vadd.f32 %v566, 1.0
    %v575 = vmul.f32 %v511, %v567
    %v576 = vmul.f32 %v512, %v568
    %v577 = vmul.f32 %v513, %v569
    %v578 = vmul.f32 %v514, %v570
    %v579 = vmul.f32 %v515, %v571
    %v580 = vmul.f32 %v516, %v572
    %v581 = vmul.f32 %v517, %v573
    %v582 = vmul.f32 %v518, %v574
    %v583 = vpack.c.bf16 %v576, %v575
    %v584 = vpack.c.bf16 %v578, %v577
    %v585 = vpack.c.bf16 %v580, %v579
    %v586 = vpack.c.bf16 %v582, %v581
    %587 = vrot.lane.b32.xlu0 %v272, 64
    %v588 = vpop.permute.xlu0 %587
    %589 = vrot.lane.b32.xlu0 %v273, 64
    %v590 = vpop.permute.xlu0 %589
    %v594 = vsel %vm276, %v583, 0
    %v597 = vsel %vm276, %v584, 0
    %v600 = vsel %vm276, %v585, 0
    %v603 = vsel %vm276, %v586, 0
    %605 = vmatpush.bf16.msra.mxu0 0
    %606 = vmatpush.bf16.msra.mxu0 0
    %607 = vmatpush.bf16.msra.mxu0 0
    %608 = vmatpush.bf16.msra.mxu0 0
    %609 = vmatpush.bf16.msra.mxu0 0
    %610 = vmatpush.bf16.msra.mxu0 0
    %611 = vmatpush.bf16.msra.mxu0 %v590
    %612 = vmatpush.bf16.msra.mxu0 %v588
    %613 = vmatmul.bf16.gmra.mxu0 %v594
    %v614 = vpop.f32.mrf.mxu0
    %v615 = vadd.f32 0.0, %v614
    %v616 = vpop.f32.mrf.mxu0
    %v617 = vadd.f32 0.0, %v616
    %618 = vmatmul.bf16.gmra.mxu0 %v597
    %v619 = vpop.f32.mrf.mxu0
    %v620 = vadd.f32 0.0, %v619
    %v621 = vpop.f32.mrf.mxu0
    %v622 = vadd.f32 0.0, %v621
    %623 = vmatmul.bf16.gmra.mxu0 %v600
    %v624 = vpop.f32.mrf.mxu0
    %v625 = vadd.f32 0.0, %v624
    %v626 = vpop.f32.mrf.mxu0
    %v627 = vadd.f32 0.0, %v626
    %628 = vmatmul.bf16.gmra.mxu0 %v603
    %v629 = vpop.f32.mrf.mxu0
    %v630 = vadd.f32 0.0, %v629
    %v631 = vpop.f32.mrf.mxu0
    %v632 = vadd.f32 0.0, %v631
    %633 = vdwg.mxu0
    %v634 = vpack.c.bf16 %v617, %v615
    %v635 = vpack.c.bf16 %v622, %v620
    %v636 = vpack.c.bf16 %v627, %v625
    %v637 = vpack.c.bf16 %v632, %v630
    %v638 = vld [vmem:[#allocation8 + $0x3] sm:$0x1]
    %v639 = vperm.slane %v638, 0
    %640 = vmatpush.bf16.msra.mxu0 0
    %641 = vmatpush.bf16.msra.mxu0 0
    %642 = vmatpush.bf16.msra.mxu0 0
    %643 = vmatpush.bf16.msra.mxu0 0
    %644 = vmatpush.bf16.msra.mxu0 %v637
    %645 = vmatpush.bf16.msra.mxu0 %v636
    %646 = vmatpush.bf16.msra.mxu0 %v635
    %647 = vmatpush.bf16.msra.mxu0 %v634
    %648 = vmatmul.bf16.gmra.mxu0 %v144
    %v649 = vpop.f32.mrf.mxu0
    %v650 = vadd.f32 %v639, %v649
    %v651 = vpop.f32.mrf.mxu0
    %v652 = vadd.f32 %v639, %v651
    %653 = vmatmul.bf16.gmra.mxu0 %v147
    %v654 = vpop.f32.mrf.mxu0
    %v655 = vadd.f32 %v639, %v654
    %v656 = vpop.f32.mrf.mxu0
    %v657 = vadd.f32 %v639, %v656
    %658 = vmatmul.bf16.gmra.mxu0 %v150
    %v659 = vpop.f32.mrf.mxu0
    %v660 = vadd.f32 %v639, %v659
    %v661 = vpop.f32.mrf.mxu0
    %v662 = vadd.f32 %v639, %v661
    %663 = vmatmul.bf16.gmra.mxu0 %v153
    %v664 = vpop.f32.mrf.mxu0
    %v665 = vadd.f32 %v639, %v664
    %v666 = vpop.f32.mrf.mxu0
    %v667 = vadd.f32 %v639, %v666
    %668 = vdwg.mxu0
    %v669 = vmul.f32 %v650, 0.5
    %v670 = vmul.f32 %v652, 0.5
    %v671 = vmul.f32 %v655, 0.5
    %v672 = vmul.f32 %v657, 0.5
    %v673 = vmul.f32 %v660, 0.5
    %v674 = vmul.f32 %v662, 0.5
    %v675 = vmul.f32 %v665, 0.5
    %v676 = vmul.f32 %v667, 0.5
    %v677 = vmul.f32 %v650, 0.044715
    %v678 = vmul.f32 %v652, 0.044715
    %v679 = vmul.f32 %v655, 0.044715
    %v680 = vmul.f32 %v657, 0.044715
    %v681 = vmul.f32 %v660, 0.044715
    %v682 = vmul.f32 %v662, 0.044715
    %v683 = vmul.f32 %v665, 0.044715
    %v684 = vmul.f32 %v667, 0.044715
    %v685 = vmul.f32 %v677, %v650
    %v686 = vmul.f32 %v678, %v652
    %v687 = vmul.f32 %v679, %v655
    %v688 = vmul.f32 %v680, %v657
    %v689 = vmul.f32 %v681, %v660
    %v690 = vmul.f32 %v682, %v662
    %v691 = vmul.f32 %v683, %v665
    %v692 = vmul.f32 %v684, %v667
    %v693 = vmul.f32 %v685, %v650
    %v694 = vmul.f32 %v686, %v652
    %v695 = vmul.f32 %v687, %v655
    %v696 = vmul.f32 %v688, %v657
    %v697 = vmul.f32 %v689, %v660
    %v698 = vmul.f32 %v690, %v662
    %v699 = vmul.f32 %v691, %v665
    %v700 = vmul.f32 %v692, %v667
    %v701 = vadd.f32 %v650, %v693
    %v702 = vadd.f32 %v652, %v694
    %v703 = vadd.f32 %v655, %v695
    %v704 = vadd.f32 %v657, %v696
    %v705 = vadd.f32 %v660, %v697
    %v706 = vadd.f32 %v662, %v698
    %v707 = vadd.f32 %v665, %v699
    %v708 = vadd.f32 %v667, %v700
    %v709 = vmul.f32 %v701, 0.7978846
    %v710 = vmul.f32 %v702, 0.7978846
    %v711 = vmul.f32 %v703, 0.7978846
    %v712 = vmul.f32 %v704, 0.7978846
    %v713 = vmul.f32 %v705, 0.7978846
    %v714 = vmul.f32 %v706, 0.7978846
    %v715 = vmul.f32 %v707, 0.7978846
    %v716 = vmul.f32 %v708, 0.7978846
    %v717 = vtanh.pop %v709
    %v718 = vtanh.pop %v710
    %v719 = vtanh.pop %v711
    %v720 = vtanh.pop %v712
    %v721 = vtanh.pop %v713
    %v722 = vtanh.pop %v714
    %v723 = vtanh.pop %v715
    %v724 = vtanh.pop %v716
    %v725 = vadd.f32 %v717, 1.0
    %v726 = vadd.f32 %v718, 1.0
    %v727 = vadd.f32 %v719, 1.0
    %v728 = vadd.f32 %v720, 1.0
    %v729 = vadd.f32 %v721, 1.0
    %v730 = vadd.f32 %v722, 1.0
    %v731 = vadd.f32 %v723, 1.0
    %v732 = vadd.f32 %v724, 1.0
    %v733 = vmul.f32 %v669, %v725
    %v734 = vmul.f32 %v670, %v726
    %v735 = vmul.f32 %v671, %v727
    %v736 = vmul.f32 %v672, %v728
    %v737 = vmul.f32 %v673, %v729
    %v738 = vmul.f32 %v674, %v730
    %v739 = vmul.f32 %v675, %v731
    %v740 = vmul.f32 %v676, %v732
    %v741 = vpack.c.bf16 %v734, %v733
    %v742 = vpack.c.bf16 %v736, %v735
    %v743 = vpack.c.bf16 %v738, %v737
    %v744 = vpack.c.bf16 %v740, %v739
    %745 = vrot.lane.b32.xlu0 %v272, 32
    %v746 = vpop.permute.xlu0 %745
    %747 = vrot.lane.b32.xlu0 %v273, 32
    %v748 = vpop.permute.xlu0 %747
    %v752 = vsel %vm276, %v741, 0
    %v755 = vsel %vm276, %v742, 0
    %v758 = vsel %vm276, %v743, 0
    %v761 = vsel %vm276, %v744, 0
    %763 = vmatpush.bf16.msra.mxu0 0
    %764 = vmatpush.bf16.msra.mxu0 0
    %765 = vmatpush.bf16.msra.mxu0 0
    %766 = vmatpush.bf16.msra.mxu0 0
    %767 = vmatpush.bf16.msra.mxu0 0
    %768 = vmatpush.bf16.msra.mxu0 0
    %769 = vmatpush.bf16.msra.mxu0 %v748
    %770 = vmatpush.bf16.msra.mxu0 %v746
    %771 = vmatmul.bf16.gmra.mxu0 %v752
    %v772 = vpop.f32.mrf.mxu0
    %v773 = vadd.f32 0.0, %v772
    %v774 = vpop.f32.mrf.mxu0
    %v775 = vadd.f32 0.0, %v774
    %776 = vmatmul.bf16.gmra.mxu0 %v755
    %v777 = vpop.f32.mrf.mxu0
    %v778 = vadd.f32 0.0, %v777
    %v779 = vpop.f32.mrf.mxu0
    %v780 = vadd.f32 0.0, %v779
    %781 = vmatmul.bf16.gmra.mxu0 %v758
    %v782 = vpop.f32.mrf.mxu0
    %v783 = vadd.f32 0.0, %v782
    %v784 = vpop.f32.mrf.mxu0
    %v785 = vadd.f32 0.0, %v784
    %786 = vmatmul.bf16.gmra.mxu0 %v761
    %v787 = vpop.f32.mrf.mxu0
    %v788 = vadd.f32 0.0, %v787
    %v789 = vpop.f32.mrf.mxu0
    %v790 = vadd.f32 0.0, %v789
    %791 = vdwg.mxu0
    %v792 = vpack.c.bf16 %v775, %v773
    %v793 = vpack.c.bf16 %v780, %v778
    %v794 = vpack.c.bf16 %v785, %v783
    %v795 = vpack.c.bf16 %v790, %v788
    %v796 = vld [vmem:[#allocation8 + $0x4] sm:$0x1]
    %v797 = vperm.slane %v796, 0
    %798 = vmatpush.bf16.msra.mxu0 0
    %799 = vmatpush.bf16.msra.mxu0 0
    %800 = vmatpush.bf16.msra.mxu0 0
    %801 = vmatpush.bf16.msra.mxu0 0
    %802 = vmatpush.bf16.msra.mxu0 %v795
    %803 = vmatpush.bf16.msra.mxu0 %v794
    %804 = vmatpush.bf16.msra.mxu0 %v793
    %805 = vmatpush.bf16.msra.mxu0 %v792
    %806 = vmatmul.bf16.gmra.mxu0 %v144
    %v807 = vpop.f32.mrf.mxu0
    %v808 = vadd.f32 %v797, %v807
    %v809 = vpop.f32.mrf.mxu0
    %v810 = vadd.f32 %v797, %v809
    %811 = vmatmul.bf16.gmra.mxu0 %v147
    %v812 = vpop.f32.mrf.mxu0
    %v813 = vadd.f32 %v797, %v812
    %v814 = vpop.f32.mrf.mxu0
    %v815 = vadd.f32 %v797, %v814
    %816 = vmatmul.bf16.gmra.mxu0 %v150
    %v817 = vpop.f32.mrf.mxu0
    %v818 = vadd.f32 %v797, %v817
    %v819 = vpop.f32.mrf.mxu0
    %v820 = vadd.f32 %v797, %v819
    %821 = vmatmul.bf16.gmra.mxu0 %v153
    %v822 = vpop.f32.mrf.mxu0
    %v823 = vadd.f32 %v797, %v822
    %v824 = vpop.f32.mrf.mxu0
    %v825 = vadd.f32 %v797, %v824
    %826 = vdwg.mxu0
    %v827 = vmul.f32 %v808, 0.5
    %v828 = vmul.f32 %v810, 0.5
    %v829 = vmul.f32 %v813, 0.5
    %v830 = vmul.f32 %v815, 0.5
    %v831 = vmul.f32 %v818, 0.5
    %v832 = vmul.f32 %v820, 0.5
    %v833 = vmul.f32 %v823, 0.5
    %v834 = vmul.f32 %v825, 0.5
    %v835 = vmul.f32 %v808, 0.044715
    %v836 = vmul.f32 %v810, 0.044715
    %v837 = vmul.f32 %v813, 0.044715
    %v838 = vmul.f32 %v815, 0.044715
    %v839 = vmul.f32 %v818, 0.044715
    %v840 = vmul.f32 %v820, 0.044715
    %v841 = vmul.f32 %v823, 0.044715
    %v842 = vmul.f32 %v825, 0.044715
    %v843 = vmul.f32 %v835, %v808
    %v844 = vmul.f32 %v836, %v810
    %v845 = vmul.f32 %v837, %v813
    %v846 = vmul.f32 %v838, %v815
    %v847 = vmul.f32 %v839, %v818
    %v848 = vmul.f32 %v840, %v820
    %v849 = vmul.f32 %v841, %v823
    %v850 = vmul.f32 %v842, %v825
    %v851 = vmul.f32 %v843, %v808
    %v852 = vmul.f32 %v844, %v810
    %v853 = vmul.f32 %v845, %v813
    %v854 = vmul.f32 %v846, %v815
    %v855 = vmul.f32 %v847, %v818
    %v856 = vmul.f32 %v848, %v820
    %v857 = vmul.f32 %v849, %v823
    %v858 = vmul.f32 %v850, %v825
    %v859 = vadd.f32 %v808, %v851
    %v860 = vadd.f32 %v810, %v852
    %v861 = vadd.f32 %v813, %v853
    %v862 = vadd.f32 %v815, %v854
    %v863 = vadd.f32 %v818, %v855
    %v864 = vadd.f32 %v820, %v856
    %v865 = vadd.f32 %v823, %v857
    %v866 = vadd.f32 %v825, %v858
    %v867 = vmul.f32 %v859, 0.7978846
    %v868 = vmul.f32 %v860, 0.7978846
    %v869 = vmul.f32 %v861, 0.7978846
    %v870 = vmul.f32 %v862, 0.7978846
    %v871 = vmul.f32 %v863, 0.7978846
    %v872 = vmul.f32 %v864, 0.7978846
    %v873 = vmul.f32 %v865, 0.7978846
    %v874 = vmul.f32 %v866, 0.7978846
    %v875 = vtanh.pop %v867
    %v876 = vtanh.pop %v868
    %v877 = vtanh.pop %v869
    %v878 = vtanh.pop %v870
    %v879 = vtanh.pop %v871
    %v880 = vtanh.pop %v872
    %v881 = vtanh.pop %v873
    %v882 = vtanh.pop %v874
    %v883 = vadd.f32 %v875, 1.0
    %v884 = vadd.f32 %v876, 1.0
    %v885 = vadd.f32 %v877, 1.0
    %v886 = vadd.f32 %v878, 1.0
    %v887 = vadd.f32 %v879, 1.0
    %v888 = vadd.f32 %v880, 1.0
    %v889 = vadd.f32 %v881, 1.0
    %v890 = vadd.f32 %v882, 1.0
    %v891 = vmul.f32 %v827, %v883
    %v892 = vmul.f32 %v828, %v884
    %v893 = vmul.f32 %v829, %v885
    %v894 = vmul.f32 %v830, %v886
    %v895 = vmul.f32 %v831, %v887
    %v896 = vmul.f32 %v832, %v888
    %v897 = vmul.f32 %v833, %v889
    %v898 = vmul.f32 %v834, %v890
    %v899 = vunpack.c.l.bf16 %v88
    %v900 = vunpack.c.l.bf16 %v89
    %v901 = vunpack.c.l.bf16 %v90
    %v902 = vunpack.c.l.bf16 %v91
    %v903 = vunpack.c.l.bf16 %v92
    %v904 = vunpack.c.l.bf16 %v93
    %v905 = vunpack.c.l.bf16 %v94
    %v906 = vunpack.c.l.bf16 %v95
    %vm907 = vcmp.gt.f32.partialorder %v899, 0.5
    %vm908 = vcmp.gt.f32.partialorder %v900, 0.5
    %vm909 = vcmp.gt.f32.partialorder %v901, 0.5
    %vm910 = vcmp.gt.f32.partialorder %v902, 0.5
    %vm911 = vcmp.gt.f32.partialorder %v903, 0.5
    %vm912 = vcmp.gt.f32.partialorder %v904, 0.5
    %vm913 = vcmp.gt.f32.partialorder %v905, 0.5
    %vm914 = vcmp.gt.f32.partialorder %v906, 0.5
    %v915 = vsel %vm907, 1, 0
    %v916 = vsel %vm908, 1, 0
    %v917 = vsel %vm909, 1, 0
    %v918 = vsel %vm910, 1, 0
    %v919 = vsel %vm911, 1, 0
    %v920 = vsel %vm912, 1, 0
    %v921 = vsel %vm913, 1, 0
    %v922 = vsel %vm914, 1, 0
    %923 = vset.pattern.permute.xlu0 32
    %924 = vperm.xlu0 %923, %v915
    %v925 = vpop.permute.xlu0 %924
    %926 = vset.pattern.permute.xlu0 32
    %927 = vperm.xlu0 %926, %v916
    %v928 = vpop.permute.xlu0 %927
    %929 = vset.pattern.permute.xlu0 32
    %930 = vperm.xlu0 %929, %v917
    %v931 = vpop.permute.xlu0 %930
    %932 = vset.pattern.permute.xlu0 32
    %933 = vperm.xlu0 %932, %v918
    %v934 = vpop.permute.xlu0 %933
    %935 = vset.pattern.permute.xlu0 32
    %936 = vperm.xlu0 %935, %v919
    %v937 = vpop.permute.xlu0 %936
    %938 = vset.pattern.permute.xlu0 32
    %939 = vperm.xlu0 %938, %v920
    %v940 = vpop.permute.xlu0 %939
    %941 = vset.pattern.permute.xlu0 32
    %942 = vperm.xlu0 %941, %v921
    %v943 = vpop.permute.xlu0 %942
    %944 = vset.pattern.permute.xlu0 32
    %945 = vperm.xlu0 %944, %v922
    %v946 = vpop.permute.xlu0 %945
    %vm947 = vcmp.eq.s32.totalorder %v925, 1
    %vm948 = vcmp.eq.s32.totalorder %v928, 1
    %vm949 = vcmp.eq.s32.totalorder %v931, 1
    %vm950 = vcmp.eq.s32.totalorder %v934, 1
    %vm951 = vcmp.eq.s32.totalorder %v937, 1
    %vm952 = vcmp.eq.s32.totalorder %v940, 1
    %vm953 = vcmp.eq.s32.totalorder %v943, 1
    %vm954 = vcmp.eq.s32.totalorder %v946, 1
    %v955 = vsel %vm947, %v891, -1e+30
    %v956 = vsel %vm948, %v892, -1e+30
    %v957 = vsel %vm949, %v893, -1e+30
    %v958 = vsel %vm950, %v894, -1e+30
    %v959 = vsel %vm951, %v895, -1e+30
    %v960 = vsel %vm952, %v896, -1e+30
    %v961 = vsel %vm953, %v897, -1e+30
    %v962 = vsel %vm954, %v898, -1e+30
    %v963 = vsel %vm276, %v955, -inf
    %v964 = vsel %vm276, %v956, -inf
    %v965 = vsel %vm276, %v957, -inf
    %v966 = vsel %vm276, %v958, -inf
    %v967 = vsel %vm276, %v959, -inf
    %v968 = vmax.f32 %v963, %v967
    %v969 = vsel %vm276, %v960, -inf
    %v970 = vmax.f32 %v964, %v969
    %v971 = vsel %vm276, %v961, -inf
    %v972 = vmax.f32 %v965, %v971
    %v973 = vsel %vm276, %v962, -inf
    %v974 = vmax.f32 %v966, %v973
    %v975 = vmax.f32 %v968, %v970
    %v976 = vmax.f32 %v972, %v974
    %v977 = vmax.f32 %v975, %v976
    %v978 = vrot.slane %v977, 4
    %v979 = vmax.f32 %v977, %v978
    %v980 = vrot.slane %v979, 2
    %v981 = vmax.f32 %v979, %v980
    %v982 = vrot.slane %v981, 1
    %v983 = vmax.f32 %v981, %v982
    %984 = vset.pattern.permute.xlu0 33
    %985 = vperm.xlu0 %984, %v915
    %v986 = vpop.permute.xlu0 %985
    %987 = vset.pattern.permute.xlu0 33
    %988 = vperm.xlu0 %987, %v916
    %v989 = vpop.permute.xlu0 %988
    %990 = vset.pattern.permute.xlu0 33
    %991 = vperm.xlu0 %990, %v917
    %v992 = vpop.permute.xlu0 %991
    %993 = vset.pattern.permute.xlu0 33
    %994 = vperm.xlu0 %993, %v918
    %v995 = vpop.permute.xlu0 %994
    %996 = vset.pattern.permute.xlu0 33
    %997 = vperm.xlu0 %996, %v919
    %v998 = vpop.permute.xlu0 %997
    %999 = vset.pattern.permute.xlu0 33
    %1000 = vperm.xlu0 %999, %v920
    %v1001 = vpop.permute.xlu0 %1000
    %1002 = vset.pattern.permute.xlu0 33
    %1003 = vperm.xlu0 %1002, %v921
    %v1004 = vpop.permute.xlu0 %1003
    %1005 = vset.pattern.permute.xlu0 33
    %1006 = vperm.xlu0 %1005, %v922
    %v1007 = vpop.permute.xlu0 %1006
    %vm1008 = vcmp.eq.s32.totalorder %v986, 1
    %vm1009 = vcmp.eq.s32.totalorder %v989, 1
    %vm1010 = vcmp.eq.s32.totalorder %v992, 1
    %vm1011 = vcmp.eq.s32.totalorder %v995, 1
    %vm1012 = vcmp.eq.s32.totalorder %v998, 1
    %vm1013 = vcmp.eq.s32.totalorder %v1001, 1
    %vm1014 = vcmp.eq.s32.totalorder %v1004, 1
    %vm1015 = vcmp.eq.s32.totalorder %v1007, 1
    %v1016 = vsel %vm1008, %v891, -1e+30
    %v1017 = vsel %vm1009, %v892, -1e+30
    %v1018 = vsel %vm1010, %v893, -1e+30
    %v1019 = vsel %vm1011, %v894, -1e+30
    %v1020 = vsel %vm1012, %v895, -1e+30
    %v1021 = vsel %vm1013, %v896, -1e+30
    %v1022 = vsel %vm1014, %v897, -1e+30
    %v1023 = vsel %vm1015, %v898, -1e+30
    %v1024 = vsel %vm276, %v1016, -inf
    %v1025 = vsel %vm276, %v1017, -inf
    %v1026 = vsel %vm276, %v1018, -inf
    %v1027 = vsel %vm276, %v1019, -inf
    %v1028 = vsel %vm276, %v1020, -inf
    %v1029 = vmax.f32 %v1024, %v1028
    %v1030 = vsel %vm276, %v1021, -inf
    %v1031 = vmax.f32 %v1025, %v1030
    %v1032 = vsel %vm276, %v1022, -inf
    %v1033 = vmax.f32 %v1026, %v1032
    %v1034 = vsel %vm276, %v1023, -inf
    %v1035 = vmax.f32 %v1027, %v1034
    %v1036 = vmax.f32 %v1029, %v1031
    %v1037 = vmax.f32 %v1033, %v1035
    %v1038 = vmax.f32 %v1036, %v1037
    %v1039 = vrot.slane %v1038, 4
    %v1040 = vmax.f32 %v1038, %v1039
    %v1041 = vrot.slane %v1040, 2
    %v1042 = vmax.f32 %v1040, %v1041
    %v1043 = vrot.slane %v1042, 1
    %v1044 = vmax.f32 %v1042, %v1043
    %vm1045 = vcmask 1040384
    %v1046 = vsel %vm1045, %v983, %v1044
    %v1047 = vpack.c.bf16 %v1046, %v1046
    %v1048 = vld [vmem:[#allocation7 + $0x4] sm:$0xf]
    %v1049 = vld [vmem:[#allocation7 + $0xc] sm:$0xf]
    %v1050 = vld [vmem:[#allocation7 + $0x14] sm:$0xf]
    %v1051 = vld [vmem:[#allocation7 + $0x1c] sm:$0xf]
    %v1052 = vld [vmem:[#allocation8 + $0x5] sm:$0x1]
    %v1053 = vperm.slane %v1052, 0
    %v1058 = vunpack.c.l.b16 %v1048
    %v1059 = vunpack.c.l.b16 %v1049
    %v1060 = vunpack.c.l.b16 %v1050
    %v1061 = vunpack.c.l.b16 %v1051
    %v1062 = vpack.c.b16 %v1059, %v1058
    %v1063 = vpack.c.b16 %v1061, %v1060
    %v1067 = vsel %vm276, %v1047, 0
    %1069 = vmatpush.bf16.msra.mxu0 0
    %1070 = vmatpush.bf16.msra.mxu0 0
    %1071 = vmatpush.bf16.msra.mxu0 0
    %1072 = vmatpush.bf16.msra.mxu0 0
    %1073 = vmatpush.bf16.msra.mxu0 0
    %1074 = vmatpush.bf16.msra.mxu0 0
    %1075 = vmatpush.bf16.msra.mxu0 %v1063
    %1076 = vmatpush.bf16.msra.mxu0 %v1062
    %1077 = vmatmul.bf16.gmra.mxu0 %v1067
    %v1078 = vpop.f32.mrf.mxu0
    %v1079 = vadd.f32 %v1053, %v1078
    %v1080 = vpop.f32.mrf.mxu0
    %1081 = vdwg.mxu0
    %1082 = vst [vmem:[#allocation10] sm:$0x3] %v1079
    // Predicated region
    $region34: #{tpu_custom_call.1} parent=1 // pred_check
      _
    $region35: #{tpu_custom_call.1} parent=1 // pred_check_branch
      %1084 = sbr.rel (0) target = $region37
    $region36: #{tpu_custom_call.1} parent=1 // pred_region
      %1086 = vsyncadd [#allocation4], 0
      %s1088 = sshll.u32 [#allocation10], 4
      %s1089 = int_to_ptr.vmem [resolvable:$true] %s1088
      %s1090 = sshll.u32 %s4, 4
      %s1091 = int_to_ptr.hbm [resolvable:$true] %s1090
      %1093 = dma.vmem_to_hbm [thread:$0]  %s1089, 32, %s1091, [#allocation4]
    $region37: #{tpu_custom_call.1} parent=1 // pred_fallthru
      _
    // Predicated region
    $region38: #{tpu_custom_call.1} parent=1 // pred_check
      _
    $region39: #{tpu_custom_call.1} parent=1 // pred_check_branch
      %1095 = sbr.rel (0) target = $region41
    $region40: #{tpu_custom_call.1} parent=1 // pred_region
      %1097 = dma.done [#allocation4], 32
    $region41: #{tpu_custom_call.1} parent=1 // pred_fallthru
      _
    %1098 = vsyncpa [#allocation3], 1
    %1099 = vsyncpa [#allocation6], 1
    %1100 = vsyncpa [#allocation9], 1
    %1101 = vsyncpa [#allocation4], 1

</llo_original>
